<compile_context>
chip_gen: v5e
topology: v5e:2x2
jax: 0.10.0
libtpu: 0.0.40
codegen_flags: <defaults>
</compile_context>

<pallas_src>
import jax
import jax.numpy as jnp
from jax.experimental import pallas as pl
from jax.experimental.pallas import tpu as pltpu


def _round_up(n, m):
    return ((n + m - 1) // m) * m


def irisnet_kernel(alpha_ref, x_ref, w1_ref, b1_ref, w2_ref, b2_ref, o_ref):
    # PReLU alpha lives in SMEM (scalar path), not a padded VMEM tile.
    alpha = alpha_ref[0]

    # fc1 on the MXU: (tb, in_f) @ (in_f, HP), bf16 operands, f32 accumulate.
    x = x_ref[...].astype(jnp.bfloat16)
    h = jnp.dot(x, w1_ref[...], preferred_element_type=jnp.float32)
    h = h + b1_ref[...]

    # PReLU with a single shared alpha (nn.PReLU() default, num_parameters=1).
    h = jnp.where(h >= 0, h, alpha * h)

    # fc2 on the MXU: (tb, HP) @ (HP, OP), bf16 operands, f32 accumulate.
    # Output is lane-dense (OP is a multiple of 128) -> unmasked full-width vst.
    out = jnp.dot(h.astype(jnp.bfloat16), w2_ref[...],
                  preferred_element_type=jnp.float32)
    out = out + b2_ref[...]
    o_ref[...] = out.astype(o_ref.dtype)


def irisnet_prepare_params(w1, b1, alpha, w2, b2):
    """One-time parameter prep (pad + transpose + bf16 cast).

    Call this at init, NOT per forward call: at these problem sizes the five
    zero-init/scatter/transpose ops cost as much as the kernel itself.

    w1: (hidden, in_f), b1: (hidden,)  -- PyTorch nn.Linear layout.
    w2: (out_f, hidden), b2: (out_f,). alpha: scalar PReLU weight.
    """
    hidden, in_f = w1.shape
    out_f = w2.shape[0]
    HP = _round_up(hidden, 128)   # hidden padded to lane width
    OP = _round_up(out_f, 128)    # output padded to lane width

    # Zero padding is numerically exact: padded hidden units are 0 through
    # PReLU (PReLU(0) = 0) and hit zero rows of w2; padded output lanes are
    # sliced off after the kernel.
    w1tp = jnp.zeros((in_f, HP), jnp.bfloat16).at[:, :hidden].set(
        w1.T.astype(jnp.bfloat16))
    b1p = jnp.zeros((1, HP), jnp.float32).at[0, :hidden].set(b1)
    w2tp = jnp.zeros((HP, OP), jnp.bfloat16).at[:hidden, :out_f].set(
        w2.T.astype(jnp.bfloat16))
    b2p = jnp.zeros((1, OP), jnp.float32).at[0, :out_f].set(b2)
    alpha_s = jnp.asarray(alpha, jnp.float32).reshape(1)

    return {
        "alpha": alpha_s, "w1tp": w1tp, "b1p": b1p, "w2tp": w2tp, "b2p": b2p,
        "in_f": in_f, "hidden": hidden, "out_f": out_f, "HP": HP, "OP": OP,
    }


def irisnet_forward(x, params, *, max_tb=512):
    """Fused IrisNet forward: fc2(prelu(fc1(x))). x: (B, in_f). Returns (B, out_f)."""
    B, in_f = x.shape
    assert in_f == params["in_f"]
    HP, OP, out_f = params["HP"], params["OP"], params["out_f"]
    dt = x.dtype

    # Tile selection:
    #  * B <= max_tb: single grid step, block spans the full batch (no padding,
    #    no per-step overhead, block_shape == full array extent is legal even
    #    when B is not a multiple of 8).
    #  * B  > max_tb: max_tb-row tiles (multiple of 8), batch padded; the
    #    per-step overhead (~0.35 us) is then well amortized and the grid's
    #    "parallel" axis lets megacore parts (v7x) shard across cores.
    if B <= max_tb:
        tb, Bp, xp = B, B, x
    else:
        tb = _round_up(max_tb, 8)
        Bp = _round_up(B, tb)
        xp = jnp.pad(x, ((0, Bp - B), (0, 0)))

    grid = (Bp // tb,)
    cost = pl.CostEstimate(
        flops=2 * Bp * (in_f * HP + HP * OP),
        transcendentals=0,
        bytes_accessed=(4 * Bp * in_f + 2 * in_f * HP + 4 * HP
                        + 2 * HP * OP + 4 * OP + 4 * Bp * OP),
    )

    out_p = pl.pallas_call(
        irisnet_kernel,
        out_shape=jax.ShapeDtypeStruct((Bp, OP), dt),
        grid_spec=pltpu.PrefetchScalarGridSpec(
            num_scalar_prefetch=0,
            grid=grid,
            in_specs=[
                pl.BlockSpec(memory_space=pltpu.MemorySpace.SMEM),  # alpha
                pl.BlockSpec((tb, in_f), lambda i: (i, 0)),         # x tile
                pl.BlockSpec((in_f, HP), lambda i: (0, 0)),         # W1^T (bf16, padded)
                pl.BlockSpec((1, HP), lambda i: (0, 0)),            # b1 (padded)
                pl.BlockSpec((HP, OP), lambda i: (0, 0)),           # W2^T (bf16, padded)
                pl.BlockSpec((1, OP), lambda i: (0, 0)),            # b2 (padded)
            ],
            out_specs=pl.BlockSpec((tb, OP), lambda i: (i, 0)),
        ),
        compiler_params=pltpu.CompilerParams(
            dimension_semantics=("parallel",)),
        cost_estimate=cost,
    )(params["alpha"], xp, params["w1tp"], params["b1p"],
      params["w2tp"], params["b2p"])

    return out_p[:B, :out_f]


if __name__ == "__main__":
    input_size, hidden_size, output_size = 4, 100, 3
    batch = 37  # deliberately not a multiple of 8 -> exercises the full-batch block

    key = jax.random.PRNGKey(0)
    kx, kw1, kb1, kw2, kb2 = jax.random.split(key, 5)

    # Deterministic synthetic parameters (PyTorch layout: fc.weight is (out, in)).
    w1 = jax.random.normal(kw1, (hidden_size, input_size), jnp.float32) * 0.1
    b1 = jax.random.normal(kb1, (hidden_size,), jnp.float32) * 0.1
    w2 = jax.random.normal(kw2, (output_size, hidden_size), jnp.float32) * 0.1
    b2 = jax.random.normal(kb2, (output_size,), jnp.float32) * 0.1
    alpha = jnp.float32(0.25)  # nn.PReLU() default single parameter

    x = jax.random.normal(kx, (batch, input_size), jnp.float32)

    # Parameter prep happens ONCE here (init), not per forward call.
    params = irisnet_prepare_params(w1, b1, alpha, w2, b2)

    out = irisnet_forward(x, params)       # single grid step for B=37
    out = jax.block_until_ready(out)

    # Reference check in plain JAX/f32 (same math as the PyTorch module).
    # Tolerance loosened vs. the f32 kernel because the MXU operands are bf16
    # (f32 accumulation keeps the error at the ~1e-3 level for these scales).
    h_ref = x @ w1.T + b1
    h_ref = jnp.where(h_ref >= 0, h_ref, alpha * h_ref)
    ref = h_ref @ w2.T + b2

    assert out.shape == (batch, output_size)
    assert jnp.allclose(out, ref, atol=2e-2, rtol=2e-2)
    print("KERNEL_OK")
</pallas_src>

<mosaic_0001>
module attributes {stable_mosaic.version = 11 : i64} {
  func.func @irisnet_kernel(%arg0: i32, %arg1: memref<1xf32, #tpu.memory_space<smem>>, %arg2: memref<37x4xf32, #tpu.memory_space<vmem>>, %arg3: memref<4x128xbf16, #tpu.memory_space<vmem>>, %arg4: memref<1x128xf32, #tpu.memory_space<vmem>>, %arg5: memref<128x128xbf16, #tpu.memory_space<vmem>>, %arg6: memref<1x128xf32, #tpu.memory_space<vmem>>, %arg7: memref<37x128xf32, #tpu.memory_space<vmem>>) attributes {dimension_semantics = [#tpu.dimension_semantics<parallel>], iteration_bounds = array<i64: 1>, scalar_prefetch = 0 : i64, scratch_operands = 0 : i64, tpu.core_type = #tpu.core_type<tc>, window_params = [{transform_indices = @transform_0, window_bounds = array<i64: 1>}, {transform_indices = @transform_1, window_bounds = array<i64: 37, 4>}, {pipeline_mode = #tpu.pipeline_mode<synchronous>, transform_indices = @transform_2, window_bounds = array<i64: 4, 128>}, {pipeline_mode = #tpu.pipeline_mode<synchronous>, transform_indices = @transform_3, window_bounds = array<i64: 1, 128>}, {pipeline_mode = #tpu.pipeline_mode<synchronous>, transform_indices = @transform_4, window_bounds = array<i64: 128, 128>}, {pipeline_mode = #tpu.pipeline_mode<synchronous>, transform_indices = @transform_5, window_bounds = array<i64: 1, 128>}, {transform_indices = @transform_6, window_bounds = array<i64: 37, 128>}]} {
    %c0 = arith.constant 0 : index
    %0 = memref.load %arg1[%c0] : memref<1xf32, #tpu.memory_space<smem>>
    %c0_0 = arith.constant 0 : index
    %c0_1 = arith.constant 0 : index
    %1 = vector.load %arg2[%c0_0, %c0_1] : memref<37x4xf32, #tpu.memory_space<vmem>>, vector<37x4xf32>
    %2 = arith.truncf %1 : vector<37x4xf32> to vector<37x4xbf16>
    %c0_2 = arith.constant 0 : index
    %c0_3 = arith.constant 0 : index
    %3 = vector.load %arg3[%c0_2, %c0_3] : memref<4x128xbf16, #tpu.memory_space<vmem>>, vector<4x128xbf16>
    %cst = arith.constant dense<0.000000e+00> : vector<37x128xf32>
    %4 = tpu.matmul %2, %3, %cst {dimension_numbers = #tpu.dot_dimension_numbers<[1], [0], [0], [1], [0, 0, 1, 1], [], []>} : vector<37x4xbf16>, vector<4x128xbf16>, vector<37x128xf32> -> vector<37x128xf32>
    %c0_4 = arith.constant 0 : index
    %c0_5 = arith.constant 0 : index
    %5 = vector.load %arg4[%c0_4, %c0_5] : memref<1x128xf32, #tpu.memory_space<vmem>>, vector<1x128xf32>
    %6 = vector.broadcast %5 : vector<1x128xf32> to vector<37x128xf32>
    %7 = arith.addf %4, %6 : vector<37x128xf32>
    %cst_6 = arith.constant 0.000000e+00 : f32
    %8 = vector.broadcast %cst_6 : f32 to vector<37x128xf32>
    %9 = arith.cmpf oge, %7, %8 : vector<37x128xf32>
    %10 = vector.broadcast %0 : f32 to vector<37x128xf32>
    %11 = arith.mulf %10, %7 : vector<37x128xf32>
    %12 = arith.select %9, %7, %11 : vector<37x128xi1>, vector<37x128xf32>
    %13 = arith.truncf %12 : vector<37x128xf32> to vector<37x128xbf16>
    %c0_7 = arith.constant 0 : index
    %c0_8 = arith.constant 0 : index
    %14 = vector.load %arg5[%c0_7, %c0_8] : memref<128x128xbf16, #tpu.memory_space<vmem>>, vector<128x128xbf16>
    %cst_9 = arith.constant dense<0.000000e+00> : vector<37x128xf32>
    %15 = tpu.matmul %13, %14, %cst_9 {dimension_numbers = #tpu.dot_dimension_numbers<[1], [0], [0], [1], [0, 0, 1, 1], [], []>} : vector<37x128xbf16>, vector<128x128xbf16>, vector<37x128xf32> -> vector<37x128xf32>
    %c0_10 = arith.constant 0 : index
    %c0_11 = arith.constant 0 : index
    %16 = vector.load %arg6[%c0_10, %c0_11] : memref<1x128xf32, #tpu.memory_space<vmem>>, vector<1x128xf32>
    %17 = vector.broadcast %16 : vector<1x128xf32> to vector<37x128xf32>
    %18 = arith.addf %15, %17 : vector<37x128xf32>
    %c0_12 = arith.constant 0 : index
    %c0_13 = arith.constant 0 : index
    %19 = vector.load %arg7[%c0_12, %c0_13] : memref<37x128xf32, #tpu.memory_space<vmem>>, vector<37x128xf32>
    tpu.vector_store %arg7[%c0_12, %c0_13], %18 {strides = array<i32>} : memref<37x128xf32, #tpu.memory_space<vmem>>, vector<37x128xf32>,
    return
  }
  func.func @transform_0(%arg0: i32) -> i32 {
    %c0_i32 = arith.constant 0 : i32
    %c0_i32_0 = arith.constant 0 : i32
    return %c0_i32 : i32
  }
  func.func @transform_1(%arg0: i32) -> (i32, i32) {
    %c0_i32 = arith.constant 0 : i32
    %c0_i32_0 = arith.constant 0 : i32
    return %arg0, %c0_i32 : i32, i32
  }
  func.func @transform_2(%arg0: i32) -> (i32, i32) {
    %c0_i32 = arith.constant 0 : i32
    %c0_i32_0 = arith.constant 0 : i32
    %c0_i32_1 = arith.constant 0 : i32
    return %c0_i32, %c0_i32_0 : i32, i32
  }
  func.func @transform_3(%arg0: i32) -> (i32, i32) {
    %c0_i32 = arith.constant 0 : i32
    %c0_i32_0 = arith.constant 0 : i32
    %c0_i32_1 = arith.constant 0 : i32
    return %c0_i32, %c0_i32_0 : i32, i32
  }
  func.func @transform_4(%arg0: i32) -> (i32, i32) {
    %c0_i32 = arith.constant 0 : i32
    %c0_i32_0 = arith.constant 0 : i32
    %c0_i32_1 = arith.constant 0 : i32
    return %c0_i32, %c0_i32_0 : i32, i32
  }
  func.func @transform_5(%arg0: i32) -> (i32, i32) {
    %c0_i32 = arith.constant 0 : i32
    %c0_i32_0 = arith.constant 0 : i32
    %c0_i32_1 = arith.constant 0 : i32
    return %c0_i32, %c0_i32_0 : i32, i32
  }
  func.func @transform_6(%arg0: i32) -> (i32, i32) {
    %c0_i32 = arith.constant 0 : i32
    %c0_i32_0 = arith.constant 0 : i32
    return %arg0, %c0_i32 : i32, i32
  }
}

</mosaic_0001>

<llo_original>
// kernel: tpu_custom_call.1
$region0: #{tpu_custom_call.1}
  #allocation0 [shape = 'u32[]', space=smem, size = 0x4, offset = 0x4, fixed_abs, tag = 'smem constant byte address 0x4 - core index']
  #allocation1 [shape = 'u32[72,128]{1,0:T(1,128)}', space=vmem, size = 0x9000, scoped, tag = 'internal scratch']
  #allocation2 [shape = 'f32[1]{0:T(128)S(6)}', space=smem, size = 0x200, scoped, tag = 'scoped memory for tpu_custom_call.1']
  %s0 = inlined_call_operand.<no memory space> [shape: f32[1], index: 0, kind: input, shape index: {}]
  %s1 = inlined_call_operand.vmem [shape: f32[37,4], index: 1, kind: input, shape index: {}]
  %s2 = inlined_call_operand.vmem [shape: bf16[4,128], index: 2, kind: input, shape index: {}]
  %s3 = inlined_call_operand.vmem [shape: f32[1,128], index: 3, kind: input, shape index: {}]
  %s4 = inlined_call_operand.hbm [shape: bf16[128,128], index: 4, kind: input, shape index: {}]
  %s5 = inlined_call_operand.vmem [shape: f32[1,128], index: 5, kind: input, shape index: {}]
  %s6 = inlined_call_operand.hbm [shape: f32[37,128], index: 6, kind: output, shape index: {}]
  %s7 = sld [smem:[#allocation0]]
  $region38: #{tpu_custom_call.1} parent=0
    _
  %s9 = ssub.s32 1, %s7
  %s10 = scalar_select 0, %s9, %s7
  %11 = sst [smem:[#allocation2]] %s0
  $region1: #{tpu_custom_call.1} parent=0
    #allocation3 [shape = 'u8[32768]{0}', space=vmem, size = 0x8000, scoped, tag = 'input window, operand 4, single buffered']
    #allocation4 [shape = 's32[1]{0}', space=sflag, size = 0x4, scoped, tag = 'scoped memory for tpu_custom_call.1']
    #allocation5 [shape = 's32[1]{0}', space=sflag, size = 0x4, scoped, tag = 'scoped memory for tpu_custom_call.1']
    #allocation6 [shape = 'u8[20480]{0}', space=vmem, size = 0x5000, scoped, tag = 'output window, operand 0, single buffered']
    %12 = vsyncpa [#allocation4], 0
    %13 = vsyncpa [#allocation5], 0
    // Predicated region
    $region2: #{tpu_custom_call.1} parent=1 // pred_check
      _
    $region3: #{tpu_custom_call.1} parent=1 // pred_check_branch
      %15 = sbr.rel (0) target = $region5
    $region4: #{tpu_custom_call.1} parent=1 // pred_region
      _
    $region5: #{tpu_custom_call.1} parent=1 // pred_fallthru
      _
    // Predicated region
    $region6: #{tpu_custom_call.1} parent=1 // pred_check
      _
    $region7: #{tpu_custom_call.1} parent=1 // pred_check_branch
      %17 = sbr.rel (0) target = $region9
    $region8: #{tpu_custom_call.1} parent=1 // pred_region
      _
    $region9: #{tpu_custom_call.1} parent=1 // pred_fallthru
      _
    // Predicated region
    $region10: #{tpu_custom_call.1} parent=1 // pred_check
      _
    $region11: #{tpu_custom_call.1} parent=1 // pred_check_branch
      %19 = sbr.rel (0) target = $region13
    $region12: #{tpu_custom_call.1} parent=1 // pred_region
      _
    $region13: #{tpu_custom_call.1} parent=1 // pred_fallthru
      _
    // Predicated region
    $region14: #{tpu_custom_call.1} parent=1 // pred_check
      _
    $region15: #{tpu_custom_call.1} parent=1 // pred_check_branch
      %21 = sbr.rel (0) target = $region17
    $region16: #{tpu_custom_call.1} parent=1 // pred_region
      _
    $region17: #{tpu_custom_call.1} parent=1 // pred_fallthru
      _
    // Predicated region
    $region18: #{tpu_custom_call.1} parent=1 // pred_check
      _
    $region19: #{tpu_custom_call.1} parent=1 // pred_check_branch
      %23 = sbr.rel (0) target = $region21
    $region20: #{tpu_custom_call.1} parent=1 // pred_region
      %25 = vsyncadd [#allocation4], 0
      %s26 = sshll.u32 %s4, 4
      %s27 = int_to_ptr.hbm [resolvable:$true] %s26
      %s28 = sshll.u32 [#allocation3], 4
      %s29 = int_to_ptr.vmem [resolvable:$true] %s28
      %34 = dma.hbm_to_vmem [thread:$0]  %s27, 1024, %s29, [#allocation4], 64, 64, 4
    $region21: #{tpu_custom_call.1} parent=1 // pred_fallthru
      _
    // Predicated region
    $region22: #{tpu_custom_call.1} parent=1 // pred_check
      _
    $region23: #{tpu_custom_call.1} parent=1 // pred_check_branch
      %36 = sbr.rel (0) target = $region25
    $region24: #{tpu_custom_call.1} parent=1 // pred_region
      _
    $region25: #{tpu_custom_call.1} parent=1 // pred_fallthru
      _
    // Predicated region
    $region26: #{tpu_custom_call.1} parent=1 // pred_check
      _
    $region27: #{tpu_custom_call.1} parent=1 // pred_check_branch
      %38 = sbr.rel (0) target = $region29
    $region28: #{tpu_custom_call.1} parent=1 // pred_region
      %40 = dma.done [#allocation4], 1024
    $region29: #{tpu_custom_call.1} parent=1 // pred_fallthru
      _
    %s42 = sld [smem:[#allocation2]]
    %v43 = vld [vmem:[%s1] sm:$0xff]
    %v44 = vld [vmem:[%s1 + $0x8] sm:$0xff]
    %v45 = vld [vmem:[%s1 + $0x10] sm:$0xff]
    %v46 = vld [vmem:[%s1 + $0x18] sm:$0xff]
    %v47 = vld [vmem:[%s1 + $0x20] sm:$0x1f]
    %v48 = vpack.c.bf16 %v44, %v43
    %v49 = vpack.c.bf16 %v46, %v45
    %v50 = vpack.c.bf16 %v47, %v47
    %v51 = vld [vmem:[%s2] sm:$0x3]
    %v52 = vld [vmem:[%s3] sm:$0x1]
    %v54 = vperm.slane %v52, 0
    %vm56 = vcmask 31744
    %v58 = vsel %vm56, %v48, 0
    %v61 = vsel %vm56, %v49, 0
    %v64 = vsel %vm56, %v50, 0
    %vm66 = vcmask 1041408
    %v68 = vsel %vm66, %v51, 0
    %70 = vmatpush.bf16.msra.mxu0 0
    %71 = vmatpush.bf16.msra.mxu0 0
    %72 = vmatpush.bf16.msra.mxu0 0
    %73 = vmatpush.bf16.msra.mxu0 0
    %74 = vmatpush.bf16.msra.mxu0 0
    %75 = vmatpush.bf16.msra.mxu0 0
    %76 = vmatpush.bf16.msra.mxu0 0
    %77 = vmatpush.bf16.msra.mxu0 %v68
    %78 = vmatmul.bf16.gmra.mxu0 %v58
    %v79 = vpop.f32.mrf.mxu0
    %v80 = vadd.f32 %v54, %v79
    %v81 = vpop.f32.mrf.mxu0
    %v82 = vadd.f32 %v54, %v81
    %83 = vmatmul.bf16.gmra.mxu0 %v61
    %v84 = vpop.f32.mrf.mxu0
    %v85 = vadd.f32 %v54, %v84
    %v86 = vpop.f32.mrf.mxu0
    %v87 = vadd.f32 %v54, %v86
    %88 = vmatmul.bf16.gmra.mxu0 %v64
    %v89 = vpop.f32.mrf.mxu0
    %v90 = vadd.f32 %v54, %v89
    %v91 = vpop.f32.mrf.mxu0
    %92 = vdwg.mxu0
    %vm93 = vcmp.ge.f32.partialorder %v80, 0.0
    %vm94 = vcmp.ge.f32.partialorder %v82, 0.0
    %vm95 = vcmp.ge.f32.partialorder %v85, 0.0
    %vm96 = vcmp.ge.f32.partialorder %v87, 0.0
    %vm97 = vcmp.ge.f32.partialorder %v90, 0.0
    %v98 = vstv %s42
    %v99 = vmul.f32 %v98, %v80
    %v100 = vmul.f32 %v98, %v82
    %v101 = vmul.f32 %v98, %v85
    %v102 = vmul.f32 %v98, %v87
    %v103 = vmul.f32 %v98, %v90
    %v104 = vsel %vm93, %v80, %v99
    %v105 = vsel %vm94, %v82, %v100
    %v106 = vsel %vm95, %v85, %v101
    %v107 = vsel %vm96, %v87, %v102
    %v108 = vsel %vm97, %v90, %v103
    %v109 = vpack.c.bf16 %v105, %v104
    %v110 = vpack.c.bf16 %v107, %v106
    %v111 = vpack.c.bf16 %v108, %v108
    %v112 = vld [vmem:[#allocation3] sm:$0xf]
    %v113 = vld [vmem:[#allocation3 + $0x4] sm:$0xf]
    %v114 = vld [vmem:[#allocation3 + $0x8] sm:$0xf]
    %v115 = vld [vmem:[#allocation3 + $0xc] sm:$0xf]
    %v116 = vld [vmem:[#allocation3 + $0x10] sm:$0xf]
    %v117 = vld [vmem:[#allocation3 + $0x14] sm:$0xf]
    %v118 = vld [vmem:[#allocation3 + $0x18] sm:$0xf]
    %v119 = vld [vmem:[#allocation3 + $0x1c] sm:$0xf]
    %v120 = vld [vmem:[#allocation3 + $0x20] sm:$0xf]
    %v121 = vld [vmem:[#allocation3 + $0x24] sm:$0xf]
    %v122 = vld [vmem:[#allocation3 + $0x28] sm:$0xf]
    %v123 = vld [vmem:[#allocation3 + $0x2c] sm:$0xf]
    %v124 = vld [vmem:[#allocation3 + $0x30] sm:$0xf]
    %v125 = vld [vmem:[#allocation3 + $0x34] sm:$0xf]
    %v126 = vld [vmem:[#allocation3 + $0x38] sm:$0xf]
    %v127 = vld [vmem:[#allocation3 + $0x3c] sm:$0xf]
    %v128 = vld [vmem:[%s5] sm:$0x1]
    %v130 = vperm.slane %v128, 0
    %v148 = vunpack.c.l.b16 %v112
    %v149 = vunpack.c.l.b16 %v113
    %v150 = vunpack.c.l.b16 %v114
    %v151 = vunpack.c.l.b16 %v115
    %v152 = vunpack.c.l.b16 %v116
    %v153 = vunpack.c.l.b16 %v117
    %v154 = vunpack.c.l.b16 %v118
    %v155 = vunpack.c.l.b16 %v119
    %v156 = vunpack.c.l.b16 %v120
    %v157 = vunpack.c.l.b16 %v121
    %v158 = vunpack.c.l.b16 %v122
    %v159 = vunpack.c.l.b16 %v123
    %v160 = vunpack.c.l.b16 %v124
    %v161 = vunpack.c.l.b16 %v125
    %v162 = vunpack.c.l.b16 %v126
    %v163 = vunpack.c.l.b16 %v127
    %v164 = vpack.c.b16 %v149, %v148
    %v165 = vpack.c.b16 %v151, %v150
    %v166 = vpack.c.b16 %v153, %v152
    %v167 = vpack.c.b16 %v155, %v154
    %v168 = vpack.c.b16 %v157, %v156
    %v169 = vpack.c.b16 %v159, %v158
    %v170 = vpack.c.b16 %v161, %v160
    %v171 = vpack.c.b16 %v163, %v162
    %180 = vmatpush.bf16.msra.mxu0 %v171
    %181 = vmatpush.bf16.msra.mxu0 %v170
    %182 = vmatpush.bf16.msra.mxu0 %v169
    %183 = vmatpush.bf16.msra.mxu0 %v168
    %184 = vmatpush.bf16.msra.mxu0 %v167
    %185 = vmatpush.bf16.msra.mxu0 %v166
    %186 = vmatpush.bf16.msra.mxu0 %v165
    %187 = vmatpush.bf16.msra.mxu0 %v164
    %188 = vmatmul.bf16.gmra.mxu0 %v109
    %v189 = vpop.f32.mrf.mxu0
    %v190 = vadd.f32 %v130, %v189
    %v191 = vpop.f32.mrf.mxu0
    %v192 = vadd.f32 %v130, %v191
    %193 = vmatmul.bf16.gmra.mxu0 %v110
    %v194 = vpop.f32.mrf.mxu0
    %v195 = vadd.f32 %v130, %v194
    %v196 = vpop.f32.mrf.mxu0
    %v197 = vadd.f32 %v130, %v196
    %198 = vmatmul.bf16.gmra.mxu0 %v111
    %v199 = vpop.f32.mrf.mxu0
    %v200 = vadd.f32 %v130, %v199
    %v201 = vpop.f32.mrf.mxu0
    %202 = vdwg.mxu0
    %203 = vst [vmem:[#allocation6] sm:$0xff] %v190
    %204 = vst [vmem:[#allocation6 + $0x8] sm:$0xff] %v192
    %205 = vst [vmem:[#allocation6 + $0x10] sm:$0xff] %v195
    %206 = vst [vmem:[#allocation6 + $0x18] sm:$0xff] %v197
    %207 = vst [vmem:[#allocation6 + $0x20] sm:$0x1f] %v200
    // Predicated region
    $region30: #{tpu_custom_call.1} parent=1 // pred_check
      _
    $region31: #{tpu_custom_call.1} parent=1 // pred_check_branch
      %209 = sbr.rel (0) target = $region33
    $region32: #{tpu_custom_call.1} parent=1 // pred_region
      %211 = vsyncadd [#allocation5], 0
      %s212 = sshll.u32 [#allocation6], 4
      %s213 = int_to_ptr.vmem [resolvable:$true] %s212
      %s214 = sshll.u32 %s6, 4
      %s215 = int_to_ptr.hbm [resolvable:$true] %s214
      %220 = dma.vmem_to_hbm [thread:$0]  %s213, 640, %s215, [#allocation5], 128, 128, 8
    $region33: #{tpu_custom_call.1} parent=1 // pred_fallthru
      _
    // Predicated region
    $region34: #{tpu_custom_call.1} parent=1 // pred_check
      _
    $region35: #{tpu_custom_call.1} parent=1 // pred_check_branch
      %222 = sbr.rel (0) target = $region37
    $region36: #{tpu_custom_call.1} parent=1 // pred_region
      %224 = dma.done [#allocation5], 640
    $region37: #{tpu_custom_call.1} parent=1 // pred_fallthru
      _
    %225 = vsyncpa [#allocation4], 1
    %226 = vsyncpa [#allocation5], 1

</llo_original>
